<compile_context>
chip_gen: v5e
topology: v5e:2x2
jax: 0.10.0
libtpu: 0.0.40
codegen_flags: <defaults>
</compile_context>

<pallas_src>
import functools

import jax
import jax.numpy as jnp
from jax import lax
from jax.experimental import pallas as pl
from jax.experimental.pallas import tpu as pltpu


def _round_up(x, m):
    return ((x + m - 1) // m) * m


def _separable_conv_kernel(x_ref, p_ref, out_ref, xpad_ref, *,
                           H, W, stride, Ho, Wo, NB, Cin, Cout, data_off,
                           pointwise_on_mxu):
    # x_ref:    (NB*Cin, H*W)        batch packed onto sublanes, spatial on lanes
    # p_ref:    (NB*Cin + Cout, PC)  packed params:
    #             rows [0, NB*Cin):      [ dw_w (9, BN1-scale folded) | dw_bias (1) ]
    #             rows [NB*Cin, +Cout):  [ pw_w (Cin, BN2-scale folded) | pw_bias (1) ]
    # out_ref:  (NB*Cout, Ho*Wo)
    # xpad_ref: (NB*Cin, pad_len)    scratch; data region starts at lane `data_off` (mult. of 128)
    HW = H * W
    HWo = Ho * Wo
    RB = NB * Cin
    pad_len = xpad_ref.shape[1]

    # ---- halo handling: zero only the halo lanes (data region is fully overwritten) ----
    xpad_ref[:, 0:data_off] = jnp.zeros((RB, data_off), jnp.float32)
    xpad_ref[:, data_off + HW:pad_len] = jnp.zeros((RB, pad_len - data_off - HW), jnp.float32)
    # lane-aligned bulk copy-in (data_off is a multiple of 128)
    xpad_ref[:, data_off:data_off + HW] = x_ref[...].astype(jnp.float32)

    # ---- unpack parameters (single small VMEM block) ----
    dw_w = p_ref[0:RB, 0:9].astype(jnp.float32)                 # (RB, 9), BN1 scale pre-folded
    dw_b = p_ref[0:RB, 9:10].astype(jnp.float32)                # (RB, 1)
    pw_w = p_ref[RB:RB + Cout, 0:Cin].astype(jnp.float32)       # (Cout, Cin), BN2 scale pre-folded
    pw_b = p_ref[RB:RB + Cout, Cin:Cin + 1].astype(jnp.float32)  # (Cout, 1)

    # ---- depthwise 3x3: 9 lane-dense VPU FMAs, taps grouped by column offset ----
    acc_l = jnp.zeros((RB, HW), jnp.float32)   # column offset -1 taps
    acc_c = jnp.zeros((RB, HW), jnp.float32)   # column offset  0 taps
    acc_r = jnp.zeros((RB, HW), jnp.float32)   # column offset +1 taps
    for kh in range(3):
        base = data_off + (kh - 1) * W
        acc_l = acc_l + xpad_ref[:, base - 1:base - 1 + HW] * dw_w[:, 3 * kh + 0:3 * kh + 1]
        acc_c = acc_c + xpad_ref[:, base:base + HW] * dw_w[:, 3 * kh + 1:3 * kh + 2]
        acc_r = acc_r + xpad_ref[:, base + 1:base + 1 + HW] * dw_w[:, 3 * kh + 2:3 * kh + 3]

    # two column masks total (zero the lanes that wrapped around a row edge)
    col = lax.broadcasted_iota(jnp.int32, (1, HW), 1) % W
    not_first_col = (col != 0).astype(jnp.float32)
    not_last_col = (col != (W - 1)).astype(jnp.float32)
    acc = acc_c + acc_l * not_first_col + acc_r * not_last_col      # (RB, HW)

    if stride != 1:
        # TODO(synk): for real stride-2 MobileNet blocks, compute only the output lanes
        # directly (even/odd lane decomposition) instead of full-resolution + subsample.
        acc = acc.reshape(RB, H, W)[:, ::stride, ::stride].reshape(RB, HWo)

    # ---- BN1 (scale already in dw_w) + ReLU ----
    h = jnp.maximum(acc + dw_b, 0.0)                                # (RB, HWo)

    # ---- pointwise 1x1 conv + BN2 (scale already in pw_w) + ReLU, lane-dense stores ----
    for b in range(NB):
        hb = h[b * Cin:(b + 1) * Cin, :]                            # (Cin, HWo)
        if pointwise_on_mxu:
            # f32 MXU matmul (keeps the 1e-4 tolerance; bf16 would not).
            y = jnp.dot(pw_w, hb, preferred_element_type=jnp.float32)
        else:
            # Tiny Cin: K would leave the MXU almost idle -> Cin lane-dense VPU FMAs.
            y = jnp.zeros((Cout, HWo), jnp.float32)
            for c in range(Cin):
                y = y + pw_w[:, c:c + 1] * hb[c:c + 1, :]
        out_ref[b * Cout:(b + 1) * Cout, :] = jnp.maximum(y + pw_b, 0.0).astype(out_ref.dtype)


def _default_batch_shards(N, Cin, Cout):
    """1 grid step on single-TC chips (v5e/v6e); 2 parallel steps on dual-TC v7x when legal."""
    try:
        kind = jax.devices()[0].device_kind.lower()
    except Exception:
        kind = ""
    n_tc = 2 if "v7" in kind else 1
    if n_tc > 1 and N % n_tc == 0:
        nb = N // n_tc
        # keep blocks sublane-aligned (second-to-last block dim must be a multiple of 8
        # when it is not the full array extent)
        if (nb * Cin) % 8 == 0 and (nb * Cout) % 8 == 0:
            return n_tc
    return 1


def separable_conv(x_nchw, params, *, stride=1, num_batch_shards=None):
    """Pallas implementation. x_nchw: (N, Cin, H, W) f32 -> (N, Cout, Ho, Wo) f32."""
    dw_w, dw_b, pw_w, pw_b = params      # BN-folded layouts: (Cin,9), (Cin,1), (Cout,Cin), (Cout,1)
    N, Cin, H, W = x_nchw.shape
    Cout = pw_w.shape[0]
    Ho = (H + 2 - 3) // stride + 1
    Wo = (W + 2 - 3) // stride + 1
    HW, HWo = H * W, Ho * Wo

    G = _default_batch_shards(N, Cin, Cout) if num_batch_shards is None else num_batch_shards
    NB = N // G
    RB = NB * Cin

    # halo buffer: [zeros | data (lane-aligned at data_off) | zeros]
    data_off = _round_up(W + 1, 128)
    pad_len = _round_up(data_off + HW + W + 1, 128)

    # single packed parameter array -> one DMA instead of six
    PC = max(10, Cin + 1)
    p = jnp.zeros((RB + Cout, PC), jnp.float32)
    p = p.at[0:RB, 0:9].set(jnp.tile(dw_w, (NB, 1)))
    p = p.at[0:RB, 9:10].set(jnp.tile(dw_b, (NB, 1)))
    p = p.at[RB:RB + Cout, 0:Cin].set(pw_w)
    p = p.at[RB:RB + Cout, Cin:Cin + 1].set(pw_b)

    x_flat = x_nchw.reshape(N * Cin, HW)      # free reshape of contiguous dims

    kernel = functools.partial(
        _separable_conv_kernel, H=H, W=W, stride=stride, Ho=Ho, Wo=Wo,
        NB=NB, Cin=Cin, Cout=Cout, data_off=data_off,
        # crossover is generation-dependent (128-wide K on v5e vs 256-wide on v6e/v7x);
        # this conservative threshold keeps the f32 VPU path for all small blocks.
        pointwise_on_mxu=(Cin * Cout >= 2048))

    # TODO(synk): for MobileNet-scale H*W (e.g. 112x112, Cin>=32) add a spatial row-tile
    # grid axis with a halo index_map and size tiles against the per-generation VMEM
    # budget (16 MiB scoped default on v5e, 64 MiB physical on v7x) with >=2 pipeline steps.
    out_flat = pl.pallas_call(
        kernel,
        out_shape=jax.ShapeDtypeStruct((N * Cout, HWo), jnp.float32),
        grid_spec=pltpu.PrefetchScalarGridSpec(
            num_scalar_prefetch=0,
            grid=(G,),
            in_specs=[
                pl.BlockSpec((RB, HW), lambda g: (g, 0)),
                pl.BlockSpec((RB + Cout, PC), lambda g: (0, 0)),
            ],
            out_specs=pl.BlockSpec((NB * Cout, HWo), lambda g: (g, 0)),
            scratch_shapes=[pltpu.VMEM((RB, pad_len), jnp.float32)],
        ),
        compiler_params=pltpu.CompilerParams(dimension_semantics=("parallel",)),
    )(x_flat, p)

    return out_flat.reshape(N, Cout, Ho, Wo)   # free reshape, NCHW end-to-end


def init_params(key, in_channels, out_channels, eps=1e-5):
    """Deterministic synthetic parameters (PyTorch shapes), BN folded for the kernel."""
    ks = jax.random.split(key, 10)
    dw_w_pt = 0.1 * jax.random.normal(ks[0], (in_channels, 1, 3, 3), jnp.float32)
    pw_w_pt = 0.1 * jax.random.normal(ks[1], (out_channels, in_channels, 1, 1), jnp.float32)
    bn1_g = jax.random.uniform(ks[2], (in_channels,), minval=0.5, maxval=1.5)
    bn1_b = 0.1 * jax.random.normal(ks[3], (in_channels,))
    bn1_m = 0.1 * jax.random.normal(ks[4], (in_channels,))
    bn1_v = jax.random.uniform(ks[5], (in_channels,), minval=0.5, maxval=1.5)
    bn2_g = jax.random.uniform(ks[6], (out_channels,), minval=0.5, maxval=1.5)
    bn2_b = 0.1 * jax.random.normal(ks[7], (out_channels,))
    bn2_m = 0.1 * jax.random.normal(ks[8], (out_channels,))
    bn2_v = jax.random.uniform(ks[9], (out_channels,), minval=0.5, maxval=1.5)

    # fold BN scales into the conv weights; keep only the biases
    s1 = bn1_g / jnp.sqrt(bn1_v + eps)                                    # (Cin,)
    s2 = bn2_g / jnp.sqrt(bn2_v + eps)                                    # (Cout,)
    dw_w = dw_w_pt[:, 0, :, :].reshape(in_channels, 9) * s1[:, None]      # (Cin, 9)
    dw_b = (bn1_b - bn1_m * s1).reshape(-1, 1)                            # (Cin, 1)
    pw_w = pw_w_pt[:, :, 0, 0] * s2[:, None]                              # (Cout, Cin)
    pw_b = (bn2_b - bn2_m * s2).reshape(-1, 1)                            # (Cout, 1)

    pt_params = (dw_w_pt, pw_w_pt, (bn1_g, bn1_b, bn1_m, bn1_v), (bn2_g, bn2_b, bn2_m, bn2_v))
    kernel_params = (dw_w, dw_b, pw_w, pw_b)
    return kernel_params, pt_params


def reference_separable_conv(x, pt_params, *, stride=1, eps=1e-5):
    """Pure-JAX reference mirroring the PyTorch module (eval-mode BN)."""
    dw_w_pt, pw_w_pt, (g1, b1, m1, v1), (g2, b2, m2, v2) = pt_params
    Cin = x.shape[1]
    dn = lax.conv_dimension_numbers(x.shape, dw_w_pt.shape, ('NCHW', 'OIHW', 'NCHW'))
    h = lax.conv_general_dilated(x, dw_w_pt, (stride, stride), ((1, 1), (1, 1)),
                                 dimension_numbers=dn, feature_group_count=Cin)
    h = (h - m1[None, :, None, None]) / jnp.sqrt(v1[None, :, None, None] + eps)
    h = h * g1[None, :, None, None] + b1[None, :, None, None]
    h = jnp.maximum(h, 0.0)
    dn2 = lax.conv_dimension_numbers(h.shape, pw_w_pt.shape, ('NCHW', 'OIHW', 'NCHW'))
    y = lax.conv_general_dilated(h, pw_w_pt, (1, 1), ((0, 0), (0, 0)), dimension_numbers=dn2)
    y = (y - m2[None, :, None, None]) / jnp.sqrt(v2[None, :, None, None] + eps)
    y = y * g2[None, :, None, None] + b2[None, :, None, None]
    return jnp.maximum(y, 0.0)


if __name__ == "__main__":
    key = jax.random.PRNGKey(0)
    k_x, k_p = jax.random.split(key)

    N, Cin, Cout, H, W = 2, 4, 8, 16, 16
    stride = 1
    x = jax.random.normal(k_x, (N, Cin, H, W), jnp.float32)

    kernel_params, pt_params = init_params(k_p, Cin, Cout)

    out = separable_conv(x, kernel_params, stride=stride)
    out = jax.block_until_ready(out)

    ref = reference_separable_conv(x, pt_params, stride=stride)
    assert out.shape == ref.shape, (out.shape, ref.shape)
    assert jnp.max(jnp.abs(out - ref)) < 1e-4, float(jnp.max(jnp.abs(out - ref)))

    print("KERNEL_OK")
</pallas_src>

<mosaic_0001>
module attributes {stable_mosaic.version = 11 : i64} {
  func.func @_separable_conv_kernel(%arg0: i32, %arg1: memref<8x256xf32, #tpu.memory_space<vmem>>, %arg2: memref<16x10xf32, #tpu.memory_space<vmem>>, %arg3: memref<16x256xf32, #tpu.memory_space<vmem>>, %arg4: memref<8x512xf32, #tpu.memory_space<vmem>>) attributes {dimension_semantics = [#tpu.dimension_semantics<parallel>], iteration_bounds = array<i64: 1>, scalar_prefetch = 0 : i64, scratch_operands = 1 : i64, tpu.core_type = #tpu.core_type<tc>, window_params = [{transform_indices = @transform_0, window_bounds = array<i64: 8, 256>}, {pipeline_mode = #tpu.pipeline_mode<synchronous>, transform_indices = @transform_1, window_bounds = array<i64: 16, 10>}, {transform_indices = @transform_2, window_bounds = array<i64: 16, 256>}]} {
    %cst = arith.constant 0.000000e+00 : f32
    %0 = vector.broadcast %cst : f32 to vector<8x128xf32>
    %c0 = arith.constant 0 : index
    %c0_0 = arith.constant 0 : index
    %1 = vector.load %arg4[%c0, %c0_0] : memref<8x512xf32, #tpu.memory_space<vmem>>, vector<8x128xf32>
    tpu.vector_store %arg4[%c0, %c0_0], %0 {strides = array<i32>} : memref<8x512xf32, #tpu.memory_space<vmem>>, vector<8x128xf32>,
    %cst_1 = arith.constant 0.000000e+00 : f32
    %2 = vector.broadcast %cst_1 : f32 to vector<8x128xf32>
    %c0_2 = arith.constant 0 : index
    %c384 = arith.constant 384 : index
    %3 = vector.load %arg4[%c0_2, %c384] : memref<8x512xf32, #tpu.memory_space<vmem>>, vector<8x128xf32>
    tpu.vector_store %arg4[%c0_2, %c384], %2 {strides = array<i32>} : memref<8x512xf32, #tpu.memory_space<vmem>>, vector<8x128xf32>,
    %c0_3 = arith.constant 0 : index
    %c0_4 = arith.constant 0 : index
    %4 = vector.load %arg1[%c0_3, %c0_4] : memref<8x256xf32, #tpu.memory_space<vmem>>, vector<8x256xf32>
    %c0_5 = arith.constant 0 : index
    %c128 = arith.constant 128 : index
    %5 = vector.load %arg4[%c0_5, %c128] : memref<8x512xf32, #tpu.memory_space<vmem>>, vector<8x256xf32>
    tpu.vector_store %arg4[%c0_5, %c128], %4 {strides = array<i32>} : memref<8x512xf32, #tpu.memory_space<vmem>>, vector<8x256xf32>,
    %c0_6 = arith.constant 0 : index
    %c0_7 = arith.constant 0 : index
    %6 = vector.load %arg2[%c0_6, %c0_7] : memref<16x10xf32, #tpu.memory_space<vmem>>, vector<8x9xf32>
    %c0_8 = arith.constant 0 : index
    %c9 = arith.constant 9 : index
    %7 = vector.load %arg2[%c0_8, %c9] : memref<16x10xf32, #tpu.memory_space<vmem>>, vector<8x1xf32>
    %c8 = arith.constant 8 : index
    %c0_9 = arith.constant 0 : index
    %8 = vector.load %arg2[%c8, %c0_9] : memref<16x10xf32, #tpu.memory_space<vmem>>, vector<8x4xf32>
    %c8_10 = arith.constant 8 : index
    %c4 = arith.constant 4 : index
    %9 = vector.load %arg2[%c8_10, %c4] : memref<16x10xf32, #tpu.memory_space<vmem>>, vector<8x1xf32>
    %cst_11 = arith.constant 0.000000e+00 : f32
    %10 = vector.broadcast %cst_11 : f32 to vector<8x256xf32>
    %cst_12 = arith.constant 0.000000e+00 : f32
    %11 = vector.broadcast %cst_12 : f32 to vector<8x256xf32>
    %cst_13 = arith.constant 0.000000e+00 : f32
    %12 = vector.broadcast %cst_13 : f32 to vector<8x256xf32>
    %c0_14 = arith.constant 0 : index
    %c111 = arith.constant 111 : index
    %13 = vector.load %arg4[%c0_14, %c111] : memref<8x512xf32, #tpu.memory_space<vmem>>, vector<8x256xf32>
    %14 = vector.extract_strided_slice %6 {offsets = [0, 0], sizes = [8, 1], strides = [1, 1]} : vector<8x9xf32> to vector<8x1xf32>
    %15 = vector.broadcast %14 : vector<8x1xf32> to vector<8x256xf32>
    %16 = arith.mulf %13, %15 : vector<8x256xf32>
    %17 = arith.addf %10, %16 : vector<8x256xf32>
    %c0_15 = arith.constant 0 : index
    %c112 = arith.constant 112 : index
    %18 = vector.load %arg4[%c0_15, %c112] : memref<8x512xf32, #tpu.memory_space<vmem>>, vector<8x256xf32>
    %19 = vector.extract_strided_slice %6 {offsets = [0, 1], sizes = [8, 1], strides = [1, 1]} : vector<8x9xf32> to vector<8x1xf32>
    %20 = vector.broadcast %19 : vector<8x1xf32> to vector<8x256xf32>
    %21 = arith.mulf %18, %20 : vector<8x256xf32>
    %22 = arith.addf %11, %21 : vector<8x256xf32>
    %c0_16 = arith.constant 0 : index
    %c113 = arith.constant 113 : index
    %23 = vector.load %arg4[%c0_16, %c113] : memref<8x512xf32, #tpu.memory_space<vmem>>, vector<8x256xf32>
    %24 = vector.extract_strided_slice %6 {offsets = [0, 2], sizes = [8, 1], strides = [1, 1]} : vector<8x9xf32> to vector<8x1xf32>
    %25 = vector.broadcast %24 : vector<8x1xf32> to vector<8x256xf32>
    %26 = arith.mulf %23, %25 : vector<8x256xf32>
    %27 = arith.addf %12, %26 : vector<8x256xf32>
    %c0_17 = arith.constant 0 : index
    %c127 = arith.constant 127 : index
    %28 = vector.load %arg4[%c0_17, %c127] : memref<8x512xf32, #tpu.memory_space<vmem>>, vector<8x256xf32>
    %29 = vector.extract_strided_slice %6 {offsets = [0, 3], sizes = [8, 1], strides = [1, 1]} : vector<8x9xf32> to vector<8x1xf32>
    %30 = vector.broadcast %29 : vector<8x1xf32> to vector<8x256xf32>
    %31 = arith.mulf %28, %30 : vector<8x256xf32>
    %32 = arith.addf %17, %31 : vector<8x256xf32>
    %c0_18 = arith.constant 0 : index
    %c128_19 = arith.constant 128 : index
    %33 = vector.load %arg4[%c0_18, %c128_19] : memref<8x512xf32, #tpu.memory_space<vmem>>, vector<8x256xf32>
    %34 = vector.extract_strided_slice %6 {offsets = [0, 4], sizes = [8, 1], strides = [1, 1]} : vector<8x9xf32> to vector<8x1xf32>
    %35 = vector.broadcast %34 : vector<8x1xf32> to vector<8x256xf32>
    %36 = arith.mulf %33, %35 : vector<8x256xf32>
    %37 = arith.addf %22, %36 : vector<8x256xf32>
    %c0_20 = arith.constant 0 : index
    %c129 = arith.constant 129 : index
    %38 = vector.load %arg4[%c0_20, %c129] : memref<8x512xf32, #tpu.memory_space<vmem>>, vector<8x256xf32>
    %39 = vector.extract_strided_slice %6 {offsets = [0, 5], sizes = [8, 1], strides = [1, 1]} : vector<8x9xf32> to vector<8x1xf32>
    %40 = vector.broadcast %39 : vector<8x1xf32> to vector<8x256xf32>
    %41 = arith.mulf %38, %40 : vector<8x256xf32>
    %42 = arith.addf %27, %41 : vector<8x256xf32>
    %c0_21 = arith.constant 0 : index
    %c143 = arith.constant 143 : index
    %43 = vector.load %arg4[%c0_21, %c143] : memref<8x512xf32, #tpu.memory_space<vmem>>, vector<8x256xf32>
    %44 = vector.extract_strided_slice %6 {offsets = [0, 6], sizes = [8, 1], strides = [1, 1]} : vector<8x9xf32> to vector<8x1xf32>
    %45 = vector.broadcast %44 : vector<8x1xf32> to vector<8x256xf32>
    %46 = arith.mulf %43, %45 : vector<8x256xf32>
    %47 = arith.addf %32, %46 : vector<8x256xf32>
    %c0_22 = arith.constant 0 : index
    %c144 = arith.constant 144 : index
    %48 = vector.load %arg4[%c0_22, %c144] : memref<8x512xf32, #tpu.memory_space<vmem>>, vector<8x256xf32>
    %49 = vector.extract_strided_slice %6 {offsets = [0, 7], sizes = [8, 1], strides = [1, 1]} : vector<8x9xf32> to vector<8x1xf32>
    %50 = vector.broadcast %49 : vector<8x1xf32> to vector<8x256xf32>
    %51 = arith.mulf %48, %50 : vector<8x256xf32>
    %52 = arith.addf %37, %51 : vector<8x256xf32>
    %c0_23 = arith.constant 0 : index
    %c145 = arith.constant 145 : index
    %53 = vector.load %arg4[%c0_23, %c145] : memref<8x512xf32, #tpu.memory_space<vmem>>, vector<8x256xf32>
    %54 = vector.extract_strided_slice %6 {offsets = [0, 8], sizes = [8, 1], strides = [1, 1]} : vector<8x9xf32> to vector<8x1xf32>
    %55 = vector.broadcast %54 : vector<8x1xf32> to vector<8x256xf32>
    %56 = arith.mulf %53, %55 : vector<8x256xf32>
    %57 = arith.addf %42, %56 : vector<8x256xf32>
    %58 = tpu.iota {dimensions = array<i32: 1>} : vector<1x256xi32>
    %c16_i32 = arith.constant 16 : i32
    %c0_i32 = arith.constant 0 : i32
    %59 = arith.cmpi eq, %c16_i32, %c0_i32 : i32
    %c1_i32 = arith.constant 1 : i32
    %60 = arith.select %59, %c1_i32, %c16_i32 : i32
    %61 = vector.broadcast %60 : i32 to vector<1x256xi32>
    %62 = arith.remsi %58, %61 : vector<1x256xi32>
    %c0_i32_24 = arith.constant 0 : i32
    %63 = vector.broadcast %c0_i32_24 : i32 to vector<1x256xi32>
    %64 = arith.cmpi ne, %62, %63 : vector<1x256xi32>
    %c0_i32_25 = arith.constant 0 : i32
    %65 = vector.broadcast %c0_i32_25 : i32 to vector<1x256xi32>
    %66 = arith.cmpi slt, %62, %65 : vector<1x256xi32>
    %c0_i32_26 = arith.constant 0 : i32
    %67 = arith.cmpi slt, %60, %c0_i32_26 : i32
    %68 = vector.broadcast %67 : i1 to vector<1x256xi1>
    %69 = vector.broadcast %68 : vector<1x256xi1> to vector<1x256xi1>
    %70 = arith.xori %66, %69 : vector<1x256xi1>
    %71 = arith.andi %70, %64 : vector<1x256xi1>
    %72 = vector.broadcast %60 : i32 to vector<1x256xi32>
    %73 = arith.addi %62, %72 : vector<1x256xi32>
    %74 = arith.select %71, %73, %62 : vector<1x256xi1>, vector<1x256xi32>
    %c0_i32_27 = arith.constant 0 : i32
    %75 = vector.broadcast %c0_i32_27 : i32 to vector<1x256xi32>
    %76 = arith.cmpi ne, %74, %75 : vector<1x256xi32>
    %77 = arith.extui %76 : vector<1x256xi1> to vector<1x256xi32>
    %78 = arith.sitofp %77 : vector<1x256xi32> to vector<1x256xf32>
    %c15_i32 = arith.constant 15 : i32
    %79 = vector.broadcast %c15_i32 : i32 to vector<1x256xi32>
    %80 = arith.cmpi ne, %74, %79 : vector<1x256xi32>
    %81 = arith.extui %80 : vector<1x256xi1> to vector<1x256xi32>
    %82 = arith.sitofp %81 : vector<1x256xi32> to vector<1x256xf32>
    %83 = vector.broadcast %78 : vector<1x256xf32> to vector<8x256xf32>
    %84 = arith.mulf %47, %83 : vector<8x256xf32>
    %85 = arith.addf %52, %84 : vector<8x256xf32>
    %86 = vector.broadcast %82 : vector<1x256xf32> to vector<8x256xf32>
    %87 = arith.mulf %57, %86 : vector<8x256xf32>
    %88 = arith.addf %85, %87 : vector<8x256xf32>
    %89 = vector.broadcast %7 : vector<8x1xf32> to vector<8x256xf32>
    %90 = arith.addf %88, %89 : vector<8x256xf32>
    %cst_28 = arith.constant 0.000000e+00 : f32
    %91 = vector.broadcast %cst_28 : f32 to vector<8x256xf32>
    %92 = arith.maximumf %90, %91 : vector<8x256xf32>
    %93 = vector.extract_strided_slice %92 {offsets = [0, 0], sizes = [4, 256], strides = [1, 1]} : vector<8x256xf32> to vector<4x256xf32>
    %cst_29 = arith.constant 0.000000e+00 : f32
    %94 = vector.broadcast %cst_29 : f32 to vector<8x256xf32>
    %95 = vector.extract_strided_slice %8 {offsets = [0, 0], sizes = [8, 1], strides = [1, 1]} : vector<8x4xf32> to vector<8x1xf32>
    %96 = vector.extract_strided_slice %93 {offsets = [0, 0], sizes = [1, 256], strides = [1, 1]} : vector<4x256xf32> to vector<1x256xf32>
    %97 = vector.broadcast %95 : vector<8x1xf32> to vector<8x256xf32>
    %98 = vector.broadcast %96 : vector<1x256xf32> to vector<8x256xf32>
    %99 = arith.mulf %97, %98 : vector<8x256xf32>
    %100 = arith.addf %94, %99 : vector<8x256xf32>
    %101 = vector.extract_strided_slice %8 {offsets = [0, 1], sizes = [8, 1], strides = [1, 1]} : vector<8x4xf32> to vector<8x1xf32>
    %102 = vector.extract_strided_slice %93 {offsets = [1, 0], sizes = [1, 256], strides = [1, 1]} : vector<4x256xf32> to vector<1x256xf32>
    %103 = vector.broadcast %101 : vector<8x1xf32> to vector<8x256xf32>
    %104 = vector.broadcast %102 : vector<1x256xf32> to vector<8x256xf32>
    %105 = arith.mulf %103, %104 : vector<8x256xf32>
    %106 = arith.addf %100, %105 : vector<8x256xf32>
    %107 = vector.extract_strided_slice %8 {offsets = [0, 2], sizes = [8, 1], strides = [1, 1]} : vector<8x4xf32> to vector<8x1xf32>
    %108 = vector.extract_strided_slice %93 {offsets = [2, 0], sizes = [1, 256], strides = [1, 1]} : vector<4x256xf32> to vector<1x256xf32>
    %109 = vector.broadcast %107 : vector<8x1xf32> to vector<8x256xf32>
    %110 = vector.broadcast %108 : vector<1x256xf32> to vector<8x256xf32>
    %111 = arith.mulf %109, %110 : vector<8x256xf32>
    %112 = arith.addf %106, %111 : vector<8x256xf32>
    %113 = vector.extract_strided_slice %8 {offsets = [0, 3], sizes = [8, 1], strides = [1, 1]} : vector<8x4xf32> to vector<8x1xf32>
    %114 = vector.extract_strided_slice %93 {offsets = [3, 0], sizes = [1, 256], strides = [1, 1]} : vector<4x256xf32> to vector<1x256xf32>
    %115 = vector.broadcast %113 : vector<8x1xf32> to vector<8x256xf32>
    %116 = vector.broadcast %114 : vector<1x256xf32> to vector<8x256xf32>
    %117 = arith.mulf %115, %116 : vector<8x256xf32>
    %118 = arith.addf %112, %117 : vector<8x256xf32>
    %119 = vector.broadcast %9 : vector<8x1xf32> to vector<8x256xf32>
    %120 = arith.addf %118, %119 : vector<8x256xf32>
    %cst_30 = arith.constant 0.000000e+00 : f32
    %121 = vector.broadcast %cst_30 : f32 to vector<8x256xf32>
    %122 = arith.maximumf %120, %121 : vector<8x256xf32>
    %c0_31 = arith.constant 0 : index
    %c0_32 = arith.constant 0 : index
    %123 = vector.load %arg3[%c0_31, %c0_32] : memref<16x256xf32, #tpu.memory_space<vmem>>, vector<8x256xf32>
    tpu.vector_store %arg3[%c0_31, %c0_32], %122 {strides = array<i32>} : memref<16x256xf32, #tpu.memory_space<vmem>>, vector<8x256xf32>,
    %124 = vector.extract_strided_slice %92 {offsets = [4, 0], sizes = [4, 256], strides = [1, 1]} : vector<8x256xf32> to vector<4x256xf32>
    %cst_33 = arith.constant 0.000000e+00 : f32
    %125 = vector.broadcast %cst_33 : f32 to vector<8x256xf32>
    %126 = vector.extract_strided_slice %8 {offsets = [0, 0], sizes = [8, 1], strides = [1, 1]} : vector<8x4xf32> to vector<8x1xf32>
    %127 = vector.extract_strided_slice %124 {offsets = [0, 0], sizes = [1, 256], strides = [1, 1]} : vector<4x256xf32> to vector<1x256xf32>
    %128 = vector.broadcast %126 : vector<8x1xf32> to vector<8x256xf32>
    %129 = vector.broadcast %127 : vector<1x256xf32> to vector<8x256xf32>
    %130 = arith.mulf %128, %129 : vector<8x256xf32>
    %131 = arith.addf %125, %130 : vector<8x256xf32>
    %132 = vector.extract_strided_slice %8 {offsets = [0, 1], sizes = [8, 1], strides = [1, 1]} : vector<8x4xf32> to vector<8x1xf32>
    %133 = vector.extract_strided_slice %124 {offsets = [1, 0], sizes = [1, 256], strides = [1, 1]} : vector<4x256xf32> to vector<1x256xf32>
    %134 = vector.broadcast %132 : vector<8x1xf32> to vector<8x256xf32>
    %135 = vector.broadcast %133 : vector<1x256xf32> to vector<8x256xf32>
    %136 = arith.mulf %134, %135 : vector<8x256xf32>
    %137 = arith.addf %131, %136 : vector<8x256xf32>
    %138 = vector.extract_strided_slice %8 {offsets = [0, 2], sizes = [8, 1], strides = [1, 1]} : vector<8x4xf32> to vector<8x1xf32>
    %139 = vector.extract_strided_slice %124 {offsets = [2, 0], sizes = [1, 256], strides = [1, 1]} : vector<4x256xf32> to vector<1x256xf32>
    %140 = vector.broadcast %138 : vector<8x1xf32> to vector<8x256xf32>
    %141 = vector.broadcast %139 : vector<1x256xf32> to vector<8x256xf32>
    %142 = arith.mulf %140, %141 : vector<8x256xf32>
    %143 = arith.addf %137, %142 : vector<8x256xf32>
    %144 = vector.extract_strided_slice %8 {offsets = [0, 3], sizes = [8, 1], strides = [1, 1]} : vector<8x4xf32> to vector<8x1xf32>
    %145 = vector.extract_strided_slice %124 {offsets = [3, 0], sizes = [1, 256], strides = [1, 1]} : vector<4x256xf32> to vector<1x256xf32>
    %146 = vector.broadcast %144 : vector<8x1xf32> to vector<8x256xf32>
    %147 = vector.broadcast %145 : vector<1x256xf32> to vector<8x256xf32>
    %148 = arith.mulf %146, %147 : vector<8x256xf32>
    %149 = arith.addf %143, %148 : vector<8x256xf32>
    %150 = vector.broadcast %9 : vector<8x1xf32> to vector<8x256xf32>
    %151 = arith.addf %149, %150 : vector<8x256xf32>
    %cst_34 = arith.constant 0.000000e+00 : f32
    %152 = vector.broadcast %cst_34 : f32 to vector<8x256xf32>
    %153 = arith.maximumf %151, %152 : vector<8x256xf32>
    %c8_35 = arith.constant 8 : index
    %c0_36 = arith.constant 0 : index
    %154 = vector.load %arg3[%c8_35, %c0_36] : memref<16x256xf32, #tpu.memory_space<vmem>>, vector<8x256xf32>
    tpu.vector_store %arg3[%c8_35, %c0_36], %153 {strides = array<i32>} : memref<16x256xf32, #tpu.memory_space<vmem>>, vector<8x256xf32>,
    return
  }
  func.func @transform_0(%arg0: i32) -> (i32, i32) {
    %c0_i32 = arith.constant 0 : i32
    %c0_i32_0 = arith.constant 0 : i32
    return %arg0, %c0_i32 : i32, i32
  }
  func.func @transform_1(%arg0: i32) -> (i32, i32) {
    %c0_i32 = arith.constant 0 : i32
    %c0_i32_0 = arith.constant 0 : i32
    %c0_i32_1 = arith.constant 0 : i32
    return %c0_i32, %c0_i32_0 : i32, i32
  }
  func.func @transform_2(%arg0: i32) -> (i32, i32) {
    %c0_i32 = arith.constant 0 : i32
    %c0_i32_0 = arith.constant 0 : i32
    return %arg0, %c0_i32 : i32, i32
  }
}

</mosaic_0001>

<llo_original>
// kernel: tpu_custom_call.1
$region0: #{tpu_custom_call.1}
  #allocation0 [shape = 'u32[]', space=smem, size = 0x4, offset = 0x4, fixed_abs, tag = 'smem constant byte address 0x4 - core index']
  #allocation1 [shape = 'u32[72,128]{1,0:T(1,128)}', space=vmem, size = 0x9000, scoped, tag = 'internal scratch']
  #allocation2 [shape = 'f32[8,512]{1,0:T(8,128)}', space=vmem, size = 0x4000, scoped, tag = 'scratch operand']
  %s0 = inlined_call_operand.hbm [shape: f32[8,256], index: 0, kind: input, shape index: {}]
  %s1 = inlined_call_operand.hbm [shape: f32[16,10], index: 1, kind: input, shape index: {}]
  %s2 = inlined_call_operand.hbm [shape: f32[16,256], index: 2, kind: output, shape index: {}]
  %s3 = sld [smem:[#allocation0]]
  $region26: #{tpu_custom_call.1} parent=0
    _
  %s5 = ssub.s32 1, %s3
  %s6 = scalar_select 0, %s5, %s3
  $region1: #{tpu_custom_call.1} parent=0
    #allocation3 [shape = 'u8[8192]{0}', space=vmem, size = 0x2000, scoped, tag = 'input window, operand 0, single buffered']
    #allocation4 [shape = 's32[1]{0}', space=sflag, size = 0x4, scoped, tag = 'scoped memory for tpu_custom_call.1']
    #allocation5 [shape = 's32[1]{0}', space=sflag, size = 0x4, scoped, tag = 'scoped memory for tpu_custom_call.1']
    #allocation6 [shape = 'u8[8192]{0}', space=vmem, size = 0x2000, scoped, tag = 'input window, operand 1, single buffered']
    #allocation7 [shape = 's32[1]{0}', space=sflag, size = 0x4, scoped, tag = 'scoped memory for tpu_custom_call.1']
    #allocation8 [shape = 'u8[16384]{0}', space=vmem, size = 0x4000, scoped, tag = 'output window, operand 0, single buffered']
    %7 = vsyncpa [#allocation4], 0
    %8 = vsyncpa [#allocation7], 0
    %9 = vsyncpa [#allocation5], 0
    // Predicated region
    $region2: #{tpu_custom_call.1} parent=1 // pred_check
      _
    $region3: #{tpu_custom_call.1} parent=1 // pred_check_branch
      %11 = sbr.rel (0) target = $region5
    $region4: #{tpu_custom_call.1} parent=1 // pred_region
      %13 = vsyncadd [#allocation4], 0
      %s15 = sshll.u32 %s0, 4
      %s16 = int_to_ptr.hbm [resolvable:$true] %s15
      %s17 = sshll.u32 [#allocation3], 4
      %s18 = int_to_ptr.vmem [resolvable:$true] %s17
      %20 = dma.hbm_to_vmem [thread:$0]  %s16, 256, %s18, [#allocation4]
    $region5: #{tpu_custom_call.1} parent=1 // pred_fallthru
      _
    // Predicated region
    $region6: #{tpu_custom_call.1} parent=1 // pred_check
      _
    $region7: #{tpu_custom_call.1} parent=1 // pred_check_branch
      %22 = sbr.rel (0) target = $region9
    $region8: #{tpu_custom_call.1} parent=1 // pred_region
      %24 = vsyncadd [#allocation7], 0
      %s25 = sshll.u32 %s1, 4
      %s26 = int_to_ptr.hbm [resolvable:$true] %s25
      %s27 = sshll.u32 [#allocation6], 4
      %s28 = int_to_ptr.vmem [resolvable:$true] %s27
      %33 = dma.hbm_to_vmem [thread:$0]  %s26, 256, %s28, [#allocation7], 128, 128, 8
    $region9: #{tpu_custom_call.1} parent=1 // pred_fallthru
      _
    // Predicated region
    $region10: #{tpu_custom_call.1} parent=1 // pred_check
      _
    $region11: #{tpu_custom_call.1} parent=1 // pred_check_branch
      %35 = sbr.rel (0) target = $region13
    $region12: #{tpu_custom_call.1} parent=1 // pred_region
      %37 = dma.done [#allocation4], 256
    $region13: #{tpu_custom_call.1} parent=1 // pred_fallthru
      _
    // Predicated region
    $region14: #{tpu_custom_call.1} parent=1 // pred_check
      _
    $region15: #{tpu_custom_call.1} parent=1 // pred_check_branch
      %39 = sbr.rel (0) target = $region17
    $region16: #{tpu_custom_call.1} parent=1 // pred_region
      %41 = dma.done [#allocation7], 256
    $region17: #{tpu_custom_call.1} parent=1 // pred_fallthru
      _
    %42 = vst [vmem:[#allocation2] sm:$0xff] 0.0
    %43 = vst [vmem:[#allocation2 + $0x18] sm:$0xff] 0.0
    %v44 = vld [vmem:[#allocation3] sm:$0xff]
    %v45 = vld [vmem:[#allocation3 + $0x8] sm:$0xff]
    %46 = vst [vmem:[#allocation2 + $0x8] sm:$0xff] %v44
    %47 = vst [vmem:[#allocation2 + $0x10] sm:$0xff] %v45
    %v48 = vld [vmem:[#allocation6] sm:$0xff]
    %v49 = vld [vmem:[#allocation6 + $0x8] sm:$0xff]
    %v50 = vld [vmem:[#allocation2] sm:$0xff]
    %v51 = vld [vmem:[#allocation2 + $0x8] sm:$0xff]
    %v52 = vld [vmem:[#allocation2 + $0x10] sm:$0xff]
    %54 = vset.pattern.permute.xlu0 0
    %55 = vperm.xlu0 %54, %v48
    %v56 = vpop.permute.xlu0 %55
    %v58 = vmul.f32 %v50, %v56
    %v59 = vmul.f32 %v51, %v56
    %v60 = vmul.f32 %v52, %v56
    %v61 = vadd.f32 %v58, 0.0
    %v62 = vadd.f32 %v59, 0.0
    %v63 = vadd.f32 %v60, 0.0
    %64 = vset.pattern.permute.xlu0 1
    %65 = vperm.xlu0 %64, %v48
    %v66 = vpop.permute.xlu0 %65
    %v68 = vmul.f32 %v50, %v66
    %v69 = vmul.f32 %v51, %v66
    %v70 = vmul.f32 %v52, %v66
    %v71 = vadd.f32 %v68, 0.0
    %v72 = vadd.f32 %v69, 0.0
    %v73 = vadd.f32 %v70, 0.0
    %74 = vset.pattern.permute.xlu0 2
    %75 = vperm.xlu0 %74, %v48
    %v76 = vpop.permute.xlu0 %75
    %v78 = vmul.f32 %v50, %v76
    %v79 = vmul.f32 %v51, %v76
    %v80 = vmul.f32 %v52, %v76
    %v81 = vadd.f32 %v78, 0.0
    %v82 = vadd.f32 %v79, 0.0
    %v83 = vadd.f32 %v80, 0.0
    %84 = vset.pattern.permute.xlu0 3
    %85 = vperm.xlu0 %84, %v48
    %v86 = vpop.permute.xlu0 %85
    %v88 = vmul.f32 %v50, %v86
    %v89 = vmul.f32 %v51, %v86
    %v90 = vmul.f32 %v52, %v86
    %94 = vrot.lane.b32.xlu0 %v88, 112
    %v95 = vpop.permute.xlu0 %94
    %96 = vrot.lane.b32.xlu0 %v89, 112
    %v97 = vpop.permute.xlu0 %96
    %98 = vrot.lane.b32.xlu0 %v90, 112
    %v99 = vpop.permute.xlu0 %98
    %vm100 = vcmask 916480
    %v101 = vsel %vm100, %v95, %v97
    %v102 = vsel %vm100, %v97, %v99
    %v106 = vadd.f32 %v61, %v101
    %v107 = vadd.f32 %v62, %v102
    %v108 = vadd.f32 %v63, %v99
    %109 = vset.pattern.permute.xlu0 4
    %110 = vperm.xlu0 %109, %v48
    %v111 = vpop.permute.xlu0 %110
    %v113 = vmul.f32 %v51, %v111
    %v114 = vmul.f32 %v52, %v111
    %117 = vrot.lane.b32.xlu0 %v113, 112
    %v118 = vpop.permute.xlu0 %117
    %119 = vrot.lane.b32.xlu0 %v114, 112
    %v120 = vpop.permute.xlu0 %119
    %v121 = vsel %vm100, %v118, %v120
    %v125 = vadd.f32 %v71, %v118
    %v126 = vadd.f32 %v72, %v121
    %v127 = vadd.f32 %v73, %v120
    %v128 = vld [vmem:[#allocation2 + $0x8] sm:$0xff]
    %v129 = vld [vmem:[#allocation2 + $0x10] sm:$0xff]
    %v130 = vld [vmem:[#allocation2 + $0x18] sm:$0xff]
    %131 = vset.pattern.permute.xlu0 5
    %132 = vperm.xlu0 %131, %v48
    %v133 = vpop.permute.xlu0 %132
    %v135 = vmul.f32 %v128, %v133
    %v136 = vmul.f32 %v129, %v133
    %v137 = vmul.f32 %v130, %v133
    %141 = vrot.lane.b32.xlu0 %v135, 112
    %v142 = vpop.permute.xlu0 %141
    %143 = vrot.lane.b32.xlu0 %v136, 112
    %v144 = vpop.permute.xlu0 %143
    %145 = vrot.lane.b32.xlu0 %v137, 112
    %v146 = vpop.permute.xlu0 %145
    %v147 = vsel %vm100, %v142, %v144
    %v148 = vsel %vm100, %v144, %v146
    %v152 = vadd.f32 %v81, %v142
    %v153 = vadd.f32 %v82, %v147
    %v154 = vadd.f32 %v83, %v148
    %155 = vset.pattern.permute.xlu0 6
    %156 = vperm.xlu0 %155, %v48
    %v157 = vpop.permute.xlu0 %156
    %v159 = vmul.f32 %v128, %v157
    %v160 = vmul.f32 %v129, %v157
    %v161 = vmul.f32 %v130, %v157
    %165 = vrot.lane.b32.xlu0 %v159, 96
    %v166 = vpop.permute.xlu0 %165
    %167 = vrot.lane.b32.xlu0 %v160, 96
    %v168 = vpop.permute.xlu0 %167
    %169 = vrot.lane.b32.xlu0 %v161, 96
    %v170 = vpop.permute.xlu0 %169
    %vm171 = vcmask 785408
    %v172 = vsel %vm171, %v166, %v168
    %v173 = vsel %vm171, %v168, %v170
    %v177 = vadd.f32 %v106, %v166
    %v178 = vadd.f32 %v107, %v172
    %v179 = vadd.f32 %v108, %v173
    %180 = vset.pattern.permute.xlu0 7
    %181 = vperm.xlu0 %180, %v48
    %v182 = vpop.permute.xlu0 %181
    %v184 = vmul.f32 %v128, %v182
    %v185 = vmul.f32 %v129, %v182
    %v186 = vmul.f32 %v130, %v182
    %190 = vrot.lane.b32.xlu0 %v184, 96
    %v191 = vpop.permute.xlu0 %190
    %192 = vrot.lane.b32.xlu0 %v185, 96
    %v193 = vpop.permute.xlu0 %192
    %194 = vrot.lane.b32.xlu0 %v186, 96
    %v195 = vpop.permute.xlu0 %194
    %v196 = vsel %vm171, %v191, %v193
    %v197 = vsel %vm171, %v193, %v195
    %v201 = vadd.f32 %v125, %v191
    %v202 = vadd.f32 %v126, %v196
    %v203 = vadd.f32 %v127, %v197
    %204 = vset.pattern.permute.xlu0 8
    %205 = vperm.xlu0 %204, %v48
    %v206 = vpop.permute.xlu0 %205
    %v208 = vmul.f32 %v128, %v206
    %v209 = vmul.f32 %v129, %v206
    %v210 = vmul.f32 %v130, %v206
    %214 = vrot.lane.b32.xlu0 %v208, 96
    %v215 = vpop.permute.xlu0 %214
    %216 = vrot.lane.b32.xlu0 %v209, 96
    %v217 = vpop.permute.xlu0 %216
    %218 = vrot.lane.b32.xlu0 %v210, 96
    %v219 = vpop.permute.xlu0 %218
    %v220 = vsel %vm171, %v215, %v217
    %v221 = vsel %vm171, %v217, %v219
    %v225 = vadd.f32 %v152, %v215
    %v226 = vadd.f32 %v153, %v220
    %v227 = vadd.f32 %v154, %v221
    %v228 = vlaneseq
    %v229 = vand.u32 %v228, 127
    %v230 = vadd.s32 %v229, 128
    %vm231 = vcmp.lt.s32.totalorder %v229, 0
    %v232 = vsub.s32 0, %v229
    %v233 = vsel %vm231, %v232, %v229
    %v234 = vshrl.u32 %v233, 4
    %v235 = vand.u32 %v233, 15
    %v236 = vsub.s32 0, %v235
    %v237 = vsel %vm231, %v236, %v235
    %vm238 = vcmp.lt.s32.totalorder %v230, 0
    %v239 = vsub.s32 0, %v230
    %v240 = vsel %vm238, %v239, %v230
    %v241 = vshrl.u32 %v240, 4
    %v242 = vand.u32 %v240, 15
    %v243 = vsub.s32 0, %v242
    %v244 = vsel %vm238, %v243, %v242
    %vm245 = vcmp.ne.s32.totalorder %v237, 0
    %vm246 = vcmp.ne.s32.totalorder %v244, 0
    %vm247 = vcmp.lt.s32.totalorder %v237, 0
    %vm248 = vcmp.lt.s32.totalorder %v244, 0
    %vm249 = vmand %vm247, %vm245
    %vm250 = vmand %vm248, %vm246
    %v251 = vadd.s32 %v237, 16
    %v252 = vadd.s32 %v244, 16
    %v253 = vsel %vm249, %v251, %v237
    %v254 = vsel %vm250, %v252, %v244
    %vm255 = vcmp.ne.s32.totalorder %v253, 0
    %vm256 = vcmp.ne.s32.totalorder %v254, 0
    %v257 = vsel %vm255, 1, 0
    %v258 = vsel %vm256, 1, 0
    %v259 = vcvt.s32.f32 %v257
    %v260 = vcvt.s32.f32 %v258
    %vm261 = vcmp.ne.s32.totalorder %v253, 15
    %vm262 = vcmp.ne.s32.totalorder %v254, 15
    %v263 = vsel %vm261, 1, 0
    %v264 = vsel %vm262, 1, 0
    %v265 = vcvt.s32.f32 %v263
    %v266 = vcvt.s32.f32 %v264
    %269 = vrot.lane.b32.xlu0 %v259, 111
    %v270 = vpop.permute.xlu0 %269
    %271 = vrot.lane.b32.xlu0 %v260, 111
    %v272 = vpop.permute.xlu0 %271
    %vm273 = vcmask 908288
    %v274 = vsel %vm273, %v270, %v272
    %v278 = vmul.f32 %v177, %v270
    %v279 = vmul.f32 %v178, %v274
    %v280 = vmul.f32 %v179, %v272
    %284 = vrot.lane.b32.xlu0 %v278, 1
    %v285 = vpop.permute.xlu0 %284
    %286 = vrot.lane.b32.xlu0 %v279, 1
    %v287 = vpop.permute.xlu0 %286
    %288 = vrot.lane.b32.xlu0 %v280, 1
    %v289 = vpop.permute.xlu0 %288
    %vm290 = vcmask 7168
    %v291 = vsel %vm290, %v285, %v287
    %v292 = vsel %vm290, %v287, %v289
    %v296 = vadd.f32 %v201, %v285
    %v297 = vadd.f32 %v202, %v291
    %v298 = vadd.f32 %v203, %v292
    %301 = vrot.lane.b32.xlu0 %v265, 113
    %v302 = vpop.permute.xlu0 %301
    %303 = vrot.lane.b32.xlu0 %v266, 113
    %v304 = vpop.permute.xlu0 %303
    %vm305 = vcmask 924672
    %v306 = vsel %vm305, %v302, %v304
    %v310 = vmul.f32 %v225, %v302
    %v311 = vmul.f32 %v226, %v306
    %v312 = vmul.f32 %v227, %v304
    %316 = vrot.lane.b32.xlu0 %v310, 127
    %v317 = vpop.permute.xlu0 %316
    %318 = vrot.lane.b32.xlu0 %v311, 127
    %v319 = vpop.permute.xlu0 %318
    %320 = vrot.lane.b32.xlu0 %v312, 127
    %v321 = vpop.permute.xlu0 %320
    %vm322 = vcmask 1039360
    %v323 = vsel %vm322, %v317, %v319
    %v324 = vsel %vm322, %v319, %v321
    %v328 = vadd.f32 %v296, %v323
    %v329 = vadd.f32 %v297, %v324
    %v330 = vadd.f32 %v298, %v321
    %331 = vset.pattern.permute.xlu0 9
    %332 = vperm.xlu0 %331, %v48
    %v333 = vpop.permute.xlu0 %332
    %v335 = vadd.f32 %v328, %v333
    %v336 = vadd.f32 %v329, %v333
    %v337 = vadd.f32 %v330, %v333
    %v338 = vmax.f32 %v335, 0.0
    %v339 = vmax.f32 %v336, 0.0
    %v340 = vmax.f32 %v337, 0.0
    %342 = vset.pattern.permute.xlu0 0
    %343 = vperm.xlu0 %342, %v49
    %v344 = vpop.permute.xlu0 %343
    %v346 = vperm.slane %v338, 0
    %v347 = vperm.slane %v339, 0
    %v348 = vperm.slane %v340, 0
    %v349 = vmul.f32 %v344, %v346
    %v350 = vmul.f32 %v344, %v347
    %v351 = vmul.f32 %v344, %v348
    %v352 = vadd.f32 %v349, 0.0
    %v353 = vadd.f32 %v350, 0.0
    %v354 = vadd.f32 %v351, 0.0
    %355 = vset.pattern.permute.xlu0 1
    %356 = vperm.xlu0 %355, %v49
    %v357 = vpop.permute.xlu0 %356
    %v359 = vperm.slane %v338, 1
    %v360 = vperm.slane %v339, 1
    %v361 = vperm.slane %v340, 1
    %v362 = vmul.f32 %v357, %v359
    %v363 = vmul.f32 %v357, %v360
    %v364 = vmul.f32 %v357, %v361
    %v365 = vadd.f32 %v352, %v362
    %v366 = vadd.f32 %v353, %v363
    %v367 = vadd.f32 %v354, %v364
    %368 = vset.pattern.permute.xlu0 2
    %369 = vperm.xlu0 %368, %v49
    %v370 = vpop.permute.xlu0 %369
    %v372 = vperm.slane %v338, 2
    %v373 = vperm.slane %v339, 2
    %v374 = vperm.slane %v340, 2
    %v375 = vmul.f32 %v370, %v372
    %v376 = vmul.f32 %v370, %v373
    %v377 = vmul.f32 %v370, %v374
    %v378 = vadd.f32 %v365, %v375
    %v379 = vadd.f32 %v366, %v376
    %v380 = vadd.f32 %v367, %v377
    %381 = vset.pattern.permute.xlu0 3
    %382 = vperm.xlu0 %381, %v49
    %v383 = vpop.permute.xlu0 %382
    %v385 = vperm.slane %v338, 3
    %v386 = vperm.slane %v339, 3
    %v387 = vperm.slane %v340, 3
    %v388 = vmul.f32 %v383, %v385
    %v389 = vmul.f32 %v383, %v386
    %v390 = vmul.f32 %v383, %v387
    %v391 = vadd.f32 %v378, %v388
    %v392 = vadd.f32 %v379, %v389
    %v393 = vadd.f32 %v380, %v390
    %394 = vset.pattern.permute.xlu0 4
    %395 = vperm.xlu0 %394, %v49
    %v396 = vpop.permute.xlu0 %395
    %v398 = vadd.f32 %v391, %v396
    %v399 = vadd.f32 %v392, %v396
    %v400 = vadd.f32 %v393, %v396
    %v401 = vmax.f32 %v398, 0.0
    %v402 = vmax.f32 %v399, 0.0
    %v403 = vmax.f32 %v400, 0.0
    %407 = vrot.lane.b32.xlu0 %v401, 16
    %v408 = vpop.permute.xlu0 %407
    %409 = vrot.lane.b32.xlu0 %v402, 16
    %v410 = vpop.permute.xlu0 %409
    %411 = vrot.lane.b32.xlu0 %v403, 16
    %v412 = vpop.permute.xlu0 %411
    %vm413 = vcmask 130048
    %v414 = vsel %vm413, %v408, %v410
    %v415 = vsel %vm413, %v410, %v412
    %418 = vst [vmem:[#allocation8] sm:$0xff] %v414
    %419 = vst [vmem:[#allocation8 + $0x8] sm:$0xff] %v415
    %v420 = vperm.slane %v338, 4
    %v421 = vperm.slane %v339, 4
    %v422 = vperm.slane %v340, 4
    %v423 = vmul.f32 %v344, %v420
    %v424 = vmul.f32 %v344, %v421
    %v425 = vmul.f32 %v344, %v422
    %v426 = vadd.f32 %v423, 0.0
    %v427 = vadd.f32 %v424, 0.0
    %v428 = vadd.f32 %v425, 0.0
    %v429 = vperm.slane %v338, 5
    %v430 = vperm.slane %v339, 5
    %v431 = vperm.slane %v340, 5
    %v432 = vmul.f32 %v357, %v429
    %v433 = vmul.f32 %v357, %v430
    %v434 = vmul.f32 %v357, %v431
    %v435 = vadd.f32 %v426, %v432
    %v436 = vadd.f32 %v427, %v433
    %v437 = vadd.f32 %v428, %v434
    %v438 = vperm.slane %v338, 6
    %v439 = vperm.slane %v339, 6
    %v440 = vperm.slane %v340, 6
    %v441 = vmul.f32 %v370, %v438
    %v442 = vmul.f32 %v370, %v439
    %v443 = vmul.f32 %v370, %v440
    %v444 = vadd.f32 %v435, %v441
    %v445 = vadd.f32 %v436, %v442
    %v446 = vadd.f32 %v437, %v443
    %v447 = vperm.slane %v338, 7
    %v448 = vperm.slane %v339, 7
    %v449 = vperm.slane %v340, 7
    %v450 = vmul.f32 %v383, %v447
    %v451 = vmul.f32 %v383, %v448
    %v452 = vmul.f32 %v383, %v449
    %v453 = vadd.f32 %v444, %v450
    %v454 = vadd.f32 %v445, %v451
    %v455 = vadd.f32 %v446, %v452
    %v456 = vadd.f32 %v453, %v396
    %v457 = vadd.f32 %v454, %v396
    %v458 = vadd.f32 %v455, %v396
    %v459 = vmax.f32 %v456, 0.0
    %v460 = vmax.f32 %v457, 0.0
    %v461 = vmax.f32 %v458, 0.0
    %465 = vrot.lane.b32.xlu0 %v459, 16
    %v466 = vpop.permute.xlu0 %465
    %467 = vrot.lane.b32.xlu0 %v460, 16
    %v468 = vpop.permute.xlu0 %467
    %469 = vrot.lane.b32.xlu0 %v461, 16
    %v470 = vpop.permute.xlu0 %469
    %v471 = vsel %vm413, %v466, %v468
    %v472 = vsel %vm413, %v468, %v470
    %475 = vst [vmem:[#allocation8 + $0x10] sm:$0xff] %v471
    %476 = vst [vmem:[#allocation8 + $0x18] sm:$0xff] %v472
    // Predicated region
    $region18: #{tpu_custom_call.1} parent=1 // pred_check
      _
    $region19: #{tpu_custom_call.1} parent=1 // pred_check_branch
      %478 = sbr.rel (0) target = $region21
    $region20: #{tpu_custom_call.1} parent=1 // pred_region
      %480 = vsyncadd [#allocation5], 0
      %s481 = sshll.u32 [#allocation8], 4
      %s482 = int_to_ptr.vmem [resolvable:$true] %s481
      %s483 = sshll.u32 %s2, 4
      %s484 = int_to_ptr.hbm [resolvable:$true] %s483
      %489 = dma.vmem_to_hbm [thread:$0]  %s482, 512, %s484, [#allocation5], 256, 256, 16
    $region21: #{tpu_custom_call.1} parent=1 // pred_fallthru
      _
    // Predicated region
    $region22: #{tpu_custom_call.1} parent=1 // pred_check
      _
    $region23: #{tpu_custom_call.1} parent=1 // pred_check_branch
      %491 = sbr.rel (0) target = $region25
    $region24: #{tpu_custom_call.1} parent=1 // pred_region
      %493 = dma.done [#allocation5], 512
    $region25: #{tpu_custom_call.1} parent=1 // pred_fallthru
      _
    %494 = vsyncpa [#allocation4], 1
    %495 = vsyncpa [#allocation7], 1
    %496 = vsyncpa [#allocation5], 1

</llo_original>
